<compile_context>
chip_gen: v7x
topology: tpu7x:2x2x1
jax: 0.10.0
libtpu: 0.0.40
codegen_flags: <defaults>
</compile_context>

<pallas_src>
import jax
import jax.numpy as jnp
from jax.experimental import pallas as pl
from jax.experimental.pallas import tpu as pltpu


def _round_up(x, m):
    return ((x + m - 1) // m) * m


def _padded_row_bytes(ncols, itemsize):
    # Per-row VMEM footprint including 128-lane tile padding of the minor dim.
    return _round_up(ncols, 128) * itemsize


def attention_kernel(feat_ref, hid_ref, Wwbd_ref, Uwt_ref, bias_ref, VSel_ref,
                     Vb_ref, out_ref):
    L = VSel_ref.shape[1]          # number of feature locations (softmax axis)
    F = out_ref.shape[1]           # feature dim
    mx = Wwbd_ref.dtype            # MXU operand dtype (bf16)

    f2 = feat_ref[...]             # (TB, L*F) lane-packed features
    f32f = f2.astype(jnp.float32)  # exact f32 copy for the context accumulation
    h = hid_ref[...]               # (TB, H)

    # U(hidden) lane-tiled to (TB, L*E); W(features) via the block-diagonal Ww.
    # Both are 128-lane-dense MXU matmuls with f32 accumulation.
    Uh = jnp.dot(h.astype(mx), Uwt_ref[...], preferred_element_type=jnp.float32)
    Wf = jnp.dot(f2.astype(mx), Wwbd_ref[...], preferred_element_type=jnp.float32)

    # ReLU(W_f + U_h + (Wb + Ub))      -> (TB, L*E) f32
    s = jnp.maximum(Wf + Uh + bias_ref[...], 0.0)

    # V(.) scores: per-location reduce over E folded into one selection matmul.
    e = jnp.dot(s.astype(mx), VSel_ref[...],
                preferred_element_type=jnp.float32) + Vb_ref[0, 0]   # (TB, L)

    # Softmax over L on a dense 2D array (no trailing size-1 dim).
    m = jnp.max(e, axis=-1, keepdims=True)
    p = jnp.exp(e - m)
    denom = jnp.sum(p, axis=-1, keepdims=True)
    w = p * pl.reciprocal(denom, approx=True)                        # (TB, L)

    # context[b, f] = sum_l w[b, l] * features[b, l, f], accumulated in f32 on
    # the VPU (static lane slices; lane rotates go to the otherwise-idle XLU).
    ctx = w[:, 0:1] * f32f[:, 0:F]
    for l in range(1, L):
        ctx = ctx + w[:, l:l + 1] * f32f[:, l * F:(l + 1) * F]
    out_ref[...] = ctx.astype(out_ref.dtype)


def attention_pallas(features, hidden, Uw, Ub, Ww, Wb, Vw, Vb, *,
                     block_b=8192, mxu_dtype=jnp.bfloat16,
                     vmem_limit_bytes=32 * 1024 * 1024):
    B, L, F = features.shape
    H = hidden.shape[1]
    E = Uw.shape[1]
    LF, LE = L * F, L * E

    # ---- lane-packed weights (tiny, built once, resident in VMEM) --------
    eyeL = jnp.eye(L, dtype=jnp.float32)
    Ww_bd = jnp.kron(eyeL, Ww).astype(mxu_dtype)             # (L*F, L*E) block-diag
    Uw_t = jnp.tile(Uw, (1, L)).astype(mxu_dtype)            # (H,   L*E)
    bias_t = jnp.tile(Ub + Wb, (1, L)).astype(jnp.float32)   # (1,   L*E)
    VSel = jnp.kron(eyeL, Vw).astype(mxu_dtype)              # (L*E, L)
    Vb_s = Vb.reshape(1, 1).astype(jnp.float32)

    # Dense 2D feature stream (free reshape of a contiguous HBM array).
    feats2 = features.reshape(B, LF)

    # ---- batch tile: as large as the (padding-aware) VMEM budget allows --
    feat_isz = jnp.dtype(features.dtype).itemsize
    per_row = 2 * (_padded_row_bytes(LF, feat_isz)    # features (double-buffered)
                   + _padded_row_bytes(H, 4)          # hidden
                   + _padded_row_bytes(F, 4))         # output
    budget = (3 * vmem_limit_bytes) // 4              # leave headroom for weights
    rows_cap = min(block_b, max(8, budget // per_row))
    rows_cap = max(8, (rows_cap // 8) * 8)

    B8 = _round_up(B, 8)
    if B8 <= rows_cap:
        # Single full-array block: legal for any B, no padding, grid of 1.
        TB, B_pad = B, B
    else:
        # Prefer a tile (multiple of 8) dividing the 8-aligned batch: no pad.
        TB = None
        for t in range(min(rows_cap, B8), 7, -8):
            if B8 % t == 0 and t >= min(512, rows_cap):
                TB = t
                break
        if TB is None:
            TB = rows_cap          # pathological divisors: fall back to padding
        B_pad = _round_up(B, TB)

    hidden_p = hidden
    if B_pad != B:
        # NOTE: jnp.pad copies the whole tensor; only reached when B is not a
        # multiple of 8 / has awkward divisors at multi-block sizes.
        feats2 = jnp.pad(feats2, ((0, B_pad - B), (0, 0)))
        hidden_p = jnp.pad(hidden, ((0, B_pad - B), (0, 0)))

    grid_spec = pltpu.PrefetchScalarGridSpec(
        num_scalar_prefetch=0,
        grid=(B_pad // TB,),
        in_specs=[
            pl.BlockSpec((TB, LF), lambda b: (b, 0)),            # packed features
            pl.BlockSpec((TB, H), lambda b: (b, 0)),             # hidden state
            # Weights: constant index maps -> resident, not re-streamed.
            pl.BlockSpec((LF, LE), lambda b: (0, 0)),            # block-diag Ww
            pl.BlockSpec((H, LE), lambda b: (0, 0)),             # lane-tiled Uw
            pl.BlockSpec((1, LE), lambda b: (0, 0)),             # Ub + Wb, tiled
            pl.BlockSpec((LE, L), lambda b: (0, 0)),             # V selection
            pl.BlockSpec(memory_space=pltpu.MemorySpace.SMEM),   # Vb scalar
        ],
        # F=32 (<128) output rows use masked lane stores; acceptable since the
        # output is ~1/8 of the feature read traffic.
        out_specs=pl.BlockSpec((TB, F), lambda b: (b, 0)),
    )

    out = pl.pallas_call(
        attention_kernel,
        out_shape=jax.ShapeDtypeStruct((B_pad, F), jnp.float32),
        grid_spec=grid_spec,
        compiler_params=pltpu.CompilerParams(
            dimension_semantics=("parallel",),   # megacore sharding on v7x
            vmem_limit_bytes=vmem_limit_bytes,
        ),
    )(feats2, hidden_p, Ww_bd, Uw_t, bias_t, VSel, Vb_s)

    return out[:B]


def attention_ref(features, hidden, Uw, Ub, Ww, Wb, Vw, Vb):
    # Pure-JAX reference mirroring the PyTorch forward (all f32).
    h = hidden[:, None, :]                              # (B, 1, H)
    U_h = h @ Uw + Ub                                   # (B, 1, E)
    W_f = features @ Ww + Wb                            # (B, L, E)
    s = jnp.maximum(W_f + U_h, 0.0)
    e = s @ Vw + Vb                                     # (B, L, 1)
    w = jax.nn.softmax(e, axis=1)
    return jnp.sum(w * features, axis=1)                # (B, F)


if __name__ == "__main__":
    B, L = 20, 8
    feature_dim, hidden_dim, embed_size = 32, 16, 32

    key = jax.random.PRNGKey(0)
    k = jax.random.split(key, 8)

    features = jax.random.normal(k[0], (B, L, feature_dim), jnp.float32)
    hidden = jax.random.normal(k[1], (B, hidden_dim), jnp.float32)

    # Deterministic "nn.Linear"-like params (already transposed for the kernel).
    Uw = jax.random.normal(k[2], (hidden_dim, embed_size), jnp.float32) * 0.1
    Ub = jax.random.normal(k[3], (1, embed_size), jnp.float32) * 0.1
    Ww = jax.random.normal(k[4], (feature_dim, embed_size), jnp.float32) * 0.1
    Wb = jax.random.normal(k[5], (1, embed_size), jnp.float32) * 0.1
    Vw = jax.random.normal(k[6], (embed_size, 1), jnp.float32) * 0.1
    Vb = jax.random.normal(k[7], (1, 1), jnp.float32) * 0.1

    ref = attention_ref(features, hidden, Uw, Ub, Ww, Wb, Vw, Vb)

    # Default tiling: single full-array block at this small B.
    out = attention_pallas(features, hidden, Uw, Ub, Ww, Wb, Vw, Vb)
    out = jax.block_until_ready(out)
    assert out.shape == (B, feature_dim)
    # bf16 MXU operands + approx reciprocal -> loosened tolerance vs f32 ref.
    assert jnp.allclose(out, ref, atol=2e-2, rtol=2e-2), "mismatch vs reference"

    # Small block to exercise the multi-step grid and the batch-padding path.
    out2 = attention_pallas(features, hidden, Uw, Ub, Ww, Wb, Vw, Vb, block_b=8)
    out2 = jax.block_until_ready(out2)
    assert jnp.allclose(out2, ref, atol=2e-2, rtol=2e-2), "mismatch vs reference (tiled)"

    print("KERNEL_OK")
</pallas_src>

<mosaic_0001>
module attributes {stable_mosaic.version = 11 : i64} {
  func.func @attention_kernel(%arg0: i32, %arg1: memref<20x256xf32, #tpu.memory_space<vmem>>, %arg2: memref<20x16xf32, #tpu.memory_space<vmem>>, %arg3: memref<256x256xbf16, #tpu.memory_space<vmem>>, %arg4: memref<16x256xbf16, #tpu.memory_space<vmem>>, %arg5: memref<1x256xf32, #tpu.memory_space<vmem>>, %arg6: memref<256x8xbf16, #tpu.memory_space<vmem>>, %arg7: memref<1x1xf32, #tpu.memory_space<smem>>, %arg8: memref<20x32xf32, #tpu.memory_space<vmem>>) attributes {dimension_semantics = [#tpu.dimension_semantics<parallel>], iteration_bounds = array<i64: 1>, scalar_prefetch = 0 : i64, scratch_operands = 0 : i64, tpu.core_type = #tpu.core_type<tc>, window_params = [{transform_indices = @transform_0, window_bounds = array<i64: 20, 256>}, {transform_indices = @transform_1, window_bounds = array<i64: 20, 16>}, {pipeline_mode = #tpu.pipeline_mode<synchronous>, transform_indices = @transform_2, window_bounds = array<i64: 256, 256>}, {pipeline_mode = #tpu.pipeline_mode<synchronous>, transform_indices = @transform_3, window_bounds = array<i64: 16, 256>}, {pipeline_mode = #tpu.pipeline_mode<synchronous>, transform_indices = @transform_4, window_bounds = array<i64: 1, 256>}, {pipeline_mode = #tpu.pipeline_mode<synchronous>, transform_indices = @transform_5, window_bounds = array<i64: 256, 8>}, {transform_indices = @transform_6, window_bounds = array<i64: 1, 1>}, {transform_indices = @transform_7, window_bounds = array<i64: 20, 32>}]} {
    %c0 = arith.constant 0 : index
    %c0_0 = arith.constant 0 : index
    %0 = vector.load %arg1[%c0, %c0_0] : memref<20x256xf32, #tpu.memory_space<vmem>>, vector<20x256xf32>
    %c0_1 = arith.constant 0 : index
    %c0_2 = arith.constant 0 : index
    %1 = vector.load %arg2[%c0_1, %c0_2] : memref<20x16xf32, #tpu.memory_space<vmem>>, vector<20x16xf32>
    %2 = arith.truncf %1 : vector<20x16xf32> to vector<20x16xbf16>
    %c0_3 = arith.constant 0 : index
    %c0_4 = arith.constant 0 : index
    %3 = vector.load %arg4[%c0_3, %c0_4] : memref<16x256xbf16, #tpu.memory_space<vmem>>, vector<16x256xbf16>
    %cst = arith.constant dense<0.000000e+00> : vector<20x256xf32>
    %4 = tpu.matmul %2, %3, %cst {dimension_numbers = #tpu.dot_dimension_numbers<[1], [0], [0], [1], [0, 0, 1, 1], [], []>} : vector<20x16xbf16>, vector<16x256xbf16>, vector<20x256xf32> -> vector<20x256xf32>
    %5 = arith.truncf %0 : vector<20x256xf32> to vector<20x256xbf16>
    %c0_5 = arith.constant 0 : index
    %c0_6 = arith.constant 0 : index
    %6 = vector.load %arg3[%c0_5, %c0_6] : memref<256x256xbf16, #tpu.memory_space<vmem>>, vector<256x256xbf16>
    %cst_7 = arith.constant dense<0.000000e+00> : vector<20x256xf32>
    %7 = tpu.matmul %5, %6, %cst_7 {dimension_numbers = #tpu.dot_dimension_numbers<[1], [0], [0], [1], [0, 0, 1, 1], [], []>} : vector<20x256xbf16>, vector<256x256xbf16>, vector<20x256xf32> -> vector<20x256xf32>
    %8 = arith.addf %7, %4 : vector<20x256xf32>
    %c0_8 = arith.constant 0 : index
    %c0_9 = arith.constant 0 : index
    %9 = vector.load %arg5[%c0_8, %c0_9] : memref<1x256xf32, #tpu.memory_space<vmem>>, vector<1x256xf32>
    %10 = vector.broadcast %9 : vector<1x256xf32> to vector<20x256xf32>
    %11 = arith.addf %8, %10 : vector<20x256xf32>
    %cst_10 = arith.constant 0.000000e+00 : f32
    %12 = vector.broadcast %cst_10 : f32 to vector<20x256xf32>
    %13 = arith.maximumf %11, %12 : vector<20x256xf32>
    %14 = arith.truncf %13 : vector<20x256xf32> to vector<20x256xbf16>
    %c0_11 = arith.constant 0 : index
    %c0_12 = arith.constant 0 : index
    %15 = vector.load %arg6[%c0_11, %c0_12] : memref<256x8xbf16, #tpu.memory_space<vmem>>, vector<256x8xbf16>
    %cst_13 = arith.constant dense<0.000000e+00> : vector<20x8xf32>
    %16 = tpu.matmul %14, %15, %cst_13 {dimension_numbers = #tpu.dot_dimension_numbers<[1], [0], [0], [1], [0, 0, 1, 1], [], []>} : vector<20x256xbf16>, vector<256x8xbf16>, vector<20x8xf32> -> vector<20x8xf32>
    %c0_14 = arith.constant 0 : index
    %c0_15 = arith.constant 0 : index
    %17 = memref.load %arg7[%c0_14, %c0_15] : memref<1x1xf32, #tpu.memory_space<smem>>
    %18 = vector.broadcast %17 : f32 to vector<20x8xf32>
    %19 = arith.addf %16, %18 : vector<20x8xf32>
    %cst_16 = arith.constant dense<0xFF800000> : vector<20xf32>
    %20 = vector.multi_reduction <maximumf>, %19, %cst_16 [1] : vector<20x8xf32> to vector<20xf32>
    %21 = vector.shape_cast %20 : vector<20xf32> to vector<20x1xf32>
    %22 = vector.broadcast %21 : vector<20x1xf32> to vector<20x8xf32>
    %23 = arith.subf %19, %22 : vector<20x8xf32>
    %24 = math.exp %23 : vector<20x8xf32>
    %cst_17 = arith.constant dense<0.000000e+00> : vector<20xf32>
    %25 = vector.multi_reduction <add>, %24, %cst_17 [1] : vector<20x8xf32> to vector<20xf32>
    %26 = vector.shape_cast %25 : vector<20xf32> to vector<20x1xf32>
    %27 = tpu.reciprocal %26 {approx = true} : vector<20x1xf32> -> vector<20x1xf32>
    %28 = vector.broadcast %27 : vector<20x1xf32> to vector<20x8xf32>
    %29 = arith.mulf %24, %28 : vector<20x8xf32>
    %30 = vector.extract_strided_slice %29 {offsets = [0, 0], sizes = [20, 1], strides = [1, 1]} : vector<20x8xf32> to vector<20x1xf32>
    %31 = vector.extract_strided_slice %0 {offsets = [0, 0], sizes = [20, 32], strides = [1, 1]} : vector<20x256xf32> to vector<20x32xf32>
    %32 = vector.broadcast %30 : vector<20x1xf32> to vector<20x32xf32>
    %33 = arith.mulf %32, %31 : vector<20x32xf32>
    %34 = vector.extract_strided_slice %29 {offsets = [0, 1], sizes = [20, 1], strides = [1, 1]} : vector<20x8xf32> to vector<20x1xf32>
    %35 = vector.extract_strided_slice %0 {offsets = [0, 32], sizes = [20, 32], strides = [1, 1]} : vector<20x256xf32> to vector<20x32xf32>
    %36 = vector.broadcast %34 : vector<20x1xf32> to vector<20x32xf32>
    %37 = arith.mulf %36, %35 : vector<20x32xf32>
    %38 = arith.addf %33, %37 : vector<20x32xf32>
    %39 = vector.extract_strided_slice %29 {offsets = [0, 2], sizes = [20, 1], strides = [1, 1]} : vector<20x8xf32> to vector<20x1xf32>
    %40 = vector.extract_strided_slice %0 {offsets = [0, 64], sizes = [20, 32], strides = [1, 1]} : vector<20x256xf32> to vector<20x32xf32>
    %41 = vector.broadcast %39 : vector<20x1xf32> to vector<20x32xf32>
    %42 = arith.mulf %41, %40 : vector<20x32xf32>
    %43 = arith.addf %38, %42 : vector<20x32xf32>
    %44 = vector.extract_strided_slice %29 {offsets = [0, 3], sizes = [20, 1], strides = [1, 1]} : vector<20x8xf32> to vector<20x1xf32>
    %45 = vector.extract_strided_slice %0 {offsets = [0, 96], sizes = [20, 32], strides = [1, 1]} : vector<20x256xf32> to vector<20x32xf32>
    %46 = vector.broadcast %44 : vector<20x1xf32> to vector<20x32xf32>
    %47 = arith.mulf %46, %45 : vector<20x32xf32>
    %48 = arith.addf %43, %47 : vector<20x32xf32>
    %49 = vector.extract_strided_slice %29 {offsets = [0, 4], sizes = [20, 1], strides = [1, 1]} : vector<20x8xf32> to vector<20x1xf32>
    %50 = vector.extract_strided_slice %0 {offsets = [0, 128], sizes = [20, 32], strides = [1, 1]} : vector<20x256xf32> to vector<20x32xf32>
    %51 = vector.broadcast %49 : vector<20x1xf32> to vector<20x32xf32>
    %52 = arith.mulf %51, %50 : vector<20x32xf32>
    %53 = arith.addf %48, %52 : vector<20x32xf32>
    %54 = vector.extract_strided_slice %29 {offsets = [0, 5], sizes = [20, 1], strides = [1, 1]} : vector<20x8xf32> to vector<20x1xf32>
    %55 = vector.extract_strided_slice %0 {offsets = [0, 160], sizes = [20, 32], strides = [1, 1]} : vector<20x256xf32> to vector<20x32xf32>
    %56 = vector.broadcast %54 : vector<20x1xf32> to vector<20x32xf32>
    %57 = arith.mulf %56, %55 : vector<20x32xf32>
    %58 = arith.addf %53, %57 : vector<20x32xf32>
    %59 = vector.extract_strided_slice %29 {offsets = [0, 6], sizes = [20, 1], strides = [1, 1]} : vector<20x8xf32> to vector<20x1xf32>
    %60 = vector.extract_strided_slice %0 {offsets = [0, 192], sizes = [20, 32], strides = [1, 1]} : vector<20x256xf32> to vector<20x32xf32>
    %61 = vector.broadcast %59 : vector<20x1xf32> to vector<20x32xf32>
    %62 = arith.mulf %61, %60 : vector<20x32xf32>
    %63 = arith.addf %58, %62 : vector<20x32xf32>
    %64 = vector.extract_strided_slice %29 {offsets = [0, 7], sizes = [20, 1], strides = [1, 1]} : vector<20x8xf32> to vector<20x1xf32>
    %65 = vector.extract_strided_slice %0 {offsets = [0, 224], sizes = [20, 32], strides = [1, 1]} : vector<20x256xf32> to vector<20x32xf32>
    %66 = vector.broadcast %64 : vector<20x1xf32> to vector<20x32xf32>
    %67 = arith.mulf %66, %65 : vector<20x32xf32>
    %68 = arith.addf %63, %67 : vector<20x32xf32>
    %c0_18 = arith.constant 0 : index
    %c0_19 = arith.constant 0 : index
    %69 = vector.load %arg8[%c0_18, %c0_19] : memref<20x32xf32, #tpu.memory_space<vmem>>, vector<20x32xf32>
    tpu.vector_store %arg8[%c0_18, %c0_19], %68 {strides = array<i32>} : memref<20x32xf32, #tpu.memory_space<vmem>>, vector<20x32xf32>,
    return
  }
  func.func @transform_0(%arg0: i32) -> (i32, i32) {
    %c0_i32 = arith.constant 0 : i32
    %c0_i32_0 = arith.constant 0 : i32
    return %arg0, %c0_i32 : i32, i32
  }
  func.func @transform_1(%arg0: i32) -> (i32, i32) {
    %c0_i32 = arith.constant 0 : i32
    %c0_i32_0 = arith.constant 0 : i32
    return %arg0, %c0_i32 : i32, i32
  }
  func.func @transform_2(%arg0: i32) -> (i32, i32) {
    %c0_i32 = arith.constant 0 : i32
    %c0_i32_0 = arith.constant 0 : i32
    %c0_i32_1 = arith.constant 0 : i32
    return %c0_i32, %c0_i32_0 : i32, i32
  }
  func.func @transform_3(%arg0: i32) -> (i32, i32) {
    %c0_i32 = arith.constant 0 : i32
    %c0_i32_0 = arith.constant 0 : i32
    %c0_i32_1 = arith.constant 0 : i32
    return %c0_i32, %c0_i32_0 : i32, i32
  }
  func.func @transform_4(%arg0: i32) -> (i32, i32) {
    %c0_i32 = arith.constant 0 : i32
    %c0_i32_0 = arith.constant 0 : i32
    %c0_i32_1 = arith.constant 0 : i32
    return %c0_i32, %c0_i32_0 : i32, i32
  }
  func.func @transform_5(%arg0: i32) -> (i32, i32) {
    %c0_i32 = arith.constant 0 : i32
    %c0_i32_0 = arith.constant 0 : i32
    %c0_i32_1 = arith.constant 0 : i32
    return %c0_i32, %c0_i32_0 : i32, i32
  }
  func.func @transform_6(%arg0: i32) -> (i32, i32) {
    %c0_i32 = arith.constant 0 : i32
    %c0_i32_0 = arith.constant 0 : i32
    %c0_i32_1 = arith.constant 0 : i32
    return %c0_i32, %c0_i32_0 : i32, i32
  }
  func.func @transform_7(%arg0: i32) -> (i32, i32) {
    %c0_i32 = arith.constant 0 : i32
    %c0_i32_0 = arith.constant 0 : i32
    return %arg0, %c0_i32 : i32, i32
  }
}

</mosaic_0001>

<llo_original>
// kernel: tpu_custom_call.1
$region0: #{tpu_custom_call.1}
  #allocation0 [shape = 'u32[]', space=smem, size = 0x4, offset = 0x4, fixed_abs, tag = 'smem constant byte address 0x4 - core index']
  #allocation1 [shape = 'u32[144,128]{1,0:T(1,128)}', space=vmem, size = 0x12000, scoped, tag = 'internal scratch']
  #allocation2 [shape = 'f32[1,1]{1,0:T(1,128)S(6)}', space=smem, size = 0x200, scoped, tag = 'scoped memory for tpu_custom_call.1']
  %s0 = inlined_call_operand.vmem [shape: f32[20,256], index: 0, kind: input, shape index: {}]
  %s1 = inlined_call_operand.vmem [shape: f32[20,16], index: 1, kind: input, shape index: {}]
  %s2 = inlined_call_operand.hbm [shape: bf16[256,256], index: 2, kind: input, shape index: {}]
  %s3 = inlined_call_operand.vmem [shape: bf16[16,256], index: 3, kind: input, shape index: {}]
  %s4 = inlined_call_operand.vmem [shape: f32[1,256], index: 4, kind: input, shape index: {}]
  %s5 = inlined_call_operand.vmem [shape: bf16[256,8], index: 5, kind: input, shape index: {}]
  %s6 = inlined_call_operand.<no memory space> [shape: f32[1,1], index: 6, kind: input, shape index: {}]
  %s7 = inlined_call_operand.hbm [shape: f32[20,32], index: 7, kind: output, shape index: {}]
  %s8 = sld [smem:[#allocation0]]
  $region42: #{tpu_custom_call.1} parent=0
    _
  %s10 = ssub.s32 1, %s8
  %s11 = scalar_select 0, %s10, %s8
  %12 = sst [smem:[#allocation2]] %s6
  $region1: #{tpu_custom_call.1} parent=0
    #allocation3 [shape = 'u8[131072]{0}', space=vmem, size = 0x20000, scoped, tag = 'input window, operand 2, single buffered']
    #allocation4 [shape = 's32[1]{0}', space=sflag, size = 0x4, scoped, tag = 'scoped memory for tpu_custom_call.1']
    #allocation5 [shape = 's32[1]{0}', space=sflag, size = 0x4, scoped, tag = 'scoped memory for tpu_custom_call.1']
    #allocation6 [shape = 'u8[12288]{0}', space=vmem, size = 0x3000, scoped, tag = 'output window, operand 0, single buffered']
    %13 = vsyncpa [#allocation4], 0
    %14 = vsyncpa [#allocation5], 0
    // Predicated region
    $region2: #{tpu_custom_call.1} parent=1 // pred_check
      _
    $region3: #{tpu_custom_call.1} parent=1 // pred_check_branch
      %16 = sbr.rel (0) target = $region5
    $region4: #{tpu_custom_call.1} parent=1 // pred_region
      _
    $region5: #{tpu_custom_call.1} parent=1 // pred_fallthru
      _
    // Predicated region
    $region6: #{tpu_custom_call.1} parent=1 // pred_check
      _
    $region7: #{tpu_custom_call.1} parent=1 // pred_check_branch
      %18 = sbr.rel (0) target = $region9
    $region8: #{tpu_custom_call.1} parent=1 // pred_region
      _
    $region9: #{tpu_custom_call.1} parent=1 // pred_fallthru
      _
    // Predicated region
    $region10: #{tpu_custom_call.1} parent=1 // pred_check
      _
    $region11: #{tpu_custom_call.1} parent=1 // pred_check_branch
      %20 = sbr.rel (0) target = $region13
    $region12: #{tpu_custom_call.1} parent=1 // pred_region
      %s22 = ssub.s32 4096, 4096
      %23 = vsyncadd [#allocation4], %s22
      %s24 = sshll.u32 [#allocation3], 4
      %s25 = int_to_ptr.vmem [resolvable:$true] %s24
      %30 = dma.hbm_to_vmem [thread:$0]  %s2, 4096, %s25, [#allocation4], 128, 128, 8
    $region13: #{tpu_custom_call.1} parent=1 // pred_fallthru
      _
    // Predicated region
    $region14: #{tpu_custom_call.1} parent=1 // pred_check
      _
    $region15: #{tpu_custom_call.1} parent=1 // pred_check_branch
      %32 = sbr.rel (0) target = $region17
    $region16: #{tpu_custom_call.1} parent=1 // pred_region
      _
    $region17: #{tpu_custom_call.1} parent=1 // pred_fallthru
      _
    // Predicated region
    $region18: #{tpu_custom_call.1} parent=1 // pred_check
      _
    $region19: #{tpu_custom_call.1} parent=1 // pred_check_branch
      %34 = sbr.rel (0) target = $region21
    $region20: #{tpu_custom_call.1} parent=1 // pred_region
      _
    $region21: #{tpu_custom_call.1} parent=1 // pred_fallthru
      _
    // Predicated region
    $region22: #{tpu_custom_call.1} parent=1 // pred_check
      _
    $region23: #{tpu_custom_call.1} parent=1 // pred_check_branch
      %36 = sbr.rel (0) target = $region25
    $region24: #{tpu_custom_call.1} parent=1 // pred_region
      _
    $region25: #{tpu_custom_call.1} parent=1 // pred_fallthru
      _
    // Predicated region
    $region26: #{tpu_custom_call.1} parent=1 // pred_check
      _
    $region27: #{tpu_custom_call.1} parent=1 // pred_check_branch
      %38 = sbr.rel (0) target = $region29
    $region28: #{tpu_custom_call.1} parent=1 // pred_region
      _
    $region29: #{tpu_custom_call.1} parent=1 // pred_fallthru
      _
    // Predicated region
    $region30: #{tpu_custom_call.1} parent=1 // pred_check
      _
    $region31: #{tpu_custom_call.1} parent=1 // pred_check_branch
      %40 = sbr.rel (0) target = $region33
    $region32: #{tpu_custom_call.1} parent=1 // pred_region
      %41 = dma.done [#allocation4], 4096
    $region33: #{tpu_custom_call.1} parent=1 // pred_fallthru
      _
    %v43 = vld [vmem:[%s0] sm:$0xff]
    %v44 = vld [vmem:[%s0 + $0x8] sm:$0xff]
    %v45 = vld [vmem:[%s0 + $0x10] sm:$0xff]
    %v46 = vld [vmem:[%s0 + $0x18] sm:$0xff]
    %v47 = vld [vmem:[%s0 + $0x20] sm:$0xf]
    %v48 = vld [vmem:[%s0 + $0x28] sm:$0xf]
    %v49 = vld [vmem:[%s1] sm:$0xff]
    %v50 = vld [vmem:[%s1 + $0x8] sm:$0xff]
    %v51 = vld [vmem:[%s1 + $0x10] sm:$0xf]
    %v52 = vpack.c.bf16 %v50, %v49
    %v53 = vpack.c.bf16 %v51, %v51
    %v54 = vld [vmem:[%s3] sm:$0xff]
    %v55 = vld [vmem:[%s3 + $0x8] sm:$0xff]
    %v58 = vunpack.c.l.b16 %v54
    %v59 = vunpack.c.h.b16 %v54
    %v60 = vunpack.c.l.b16 %v55
    %v61 = vunpack.c.h.b16 %v55
    %v62 = vpack.c.b16 %v60, %v58
    %v63 = vpack.c.b16 %v61, %v59
    %vm66 = vcmask 130048
    %v68 = vsel %vm66, %v52, 0
    %v71 = vsel %vm66, %v53, 0
    %73 = vmatprep.subr.bf16.mxu0 %v63
    %74 = vmatpush1.bf16.msra.mxu0 %v62
    %75 = vmatprep.subr.bf16.mxu0 0
    %76 = vmatpush1.bf16.msra.mxu0 0
    %77 = vmatprep.subr.bf16.mxu0 0
    %78 = vmatpush1.bf16.msra.mxu0 0
    %79 = vmatprep.subr.bf16.mxu0 0
    %80 = vmatpush1.bf16.msra.mxu0 0
    %81 = vmatprep.subr.bf16.mxu0 0
    %82 = vmatpush1.bf16.msra.mxu0 0
    %83 = vmatprep.subr.bf16.mxu0 0
    %84 = vmatpush1.bf16.msra.mxu0 0
    %85 = vmatprep.subr.bf16.mxu0 0
    %86 = vmatpush1.bf16.msra.mxu0 0
    %87 = vmatprep.subr.bf16.mxu0 0
    %88 = vmatpush1.bf16.msra.mxu0 0
    %89 = vmatprep.subr.bf16.mxu0 0
    %90 = vmatpush1.bf16.msra.mxu0 0
    %91 = vmatprep.subr.bf16.mxu0 0
    %92 = vmatpush1.bf16.msra.mxu0 0
    %93 = vmatprep.subr.bf16.mxu0 0
    %94 = vmatpush1.bf16.msra.mxu0 0
    %95 = vmatprep.subr.bf16.mxu0 0
    %96 = vmatpush1.bf16.msra.mxu0 0
    %97 = vmatprep.subr.bf16.mxu0 0
    %98 = vmatpush1.bf16.msra.mxu0 0
    %99 = vmatprep.subr.bf16.mxu0 0
    %100 = vmatpush1.bf16.msra.mxu0 0
    %101 = vmatprep.subr.bf16.mxu0 0
    %102 = vmatpush1.bf16.msra.mxu0 0
    %103 = vmatprep.subr.bf16.mxu0 0
    %104 = vmatpush1.bf16.msra.mxu0 0
    %105 = vmatprep.mubr.bf16.mxu0 0
    %106 = vmatmul.mubr.bf16.gmra.mrb[0].mxu0 %v68
    %v107 = vpop.f32.mrb[0].mxu0
    %v108 = vadd.f32 0.0, %v107
    %v109 = vpop.f32.mrb[0].mxu0
    %v110 = vadd.f32 0.0, %v109
    %v111 = vpop.f32.mrb[0].mxu0
    %v112 = vadd.f32 0.0, %v111
    %v113 = vpop.f32.mrb[0].mxu0
    %v114 = vadd.f32 0.0, %v113
    %115 = vmatprep.mubr.bf16.mxu0 0
    %116 = vmatmul.mubr.bf16.gmra.mrb[0].mxu0 %v71
    %v117 = vpop.f32.mrb[0].mxu0
    %v118 = vadd.f32 0.0, %v117
    %v119 = vpop.f32.mrb[0].mxu0
    %v120 = vadd.f32 0.0, %v119
    %v121 = vpop.f32.mrb[0].mxu0
    %v122 = vpop.f32.mrb[0].mxu0
    %123 = vdwg.mxu0
    %v124 = vpack.c.bf16 %v45, %v43
    %v125 = vpack.c.bf16 %v46, %v44
    %v126 = vpack.c.bf16 %v47, %v47
    %v127 = vpack.c.bf16 %v48, %v48
    %v128 = vld [vmem:[#allocation3] sm:$0xff]
    %v129 = vld [vmem:[#allocation3 + $0x8] sm:$0xff]
    %v130 = vld [vmem:[#allocation3 + $0x10] sm:$0xff]
    %v131 = vld [vmem:[#allocation3 + $0x18] sm:$0xff]
    %v132 = vld [vmem:[#allocation3 + $0x20] sm:$0xff]
    %v133 = vld [vmem:[#allocation3 + $0x28] sm:$0xff]
    %v134 = vld [vmem:[#allocation3 + $0x30] sm:$0xff]
    %v135 = vld [vmem:[#allocation3 + $0x38] sm:$0xff]
    %v136 = vld [vmem:[#allocation3 + $0x40] sm:$0xff]
    %v137 = vld [vmem:[#allocation3 + $0x48] sm:$0xff]
    %v138 = vld [vmem:[#allocation3 + $0x50] sm:$0xff]
    %v139 = vld [vmem:[#allocation3 + $0x58] sm:$0xff]
    %v140 = vld [vmem:[#allocation3 + $0x60] sm:$0xff]
    %v141 = vld [vmem:[#allocation3 + $0x68] sm:$0xff]
    %v142 = vld [vmem:[#allocation3 + $0x70] sm:$0xff]
    %v143 = vld [vmem:[#allocation3 + $0x78] sm:$0xff]
    %v144 = vld [vmem:[#allocation3 + $0x80] sm:$0xff]
    %v145 = vld [vmem:[#allocation3 + $0x88] sm:$0xff]
    %v146 = vld [vmem:[#allocation3 + $0x90] sm:$0xff]
    %v147 = vld [vmem:[#allocation3 + $0x98] sm:$0xff]
    %v148 = vld [vmem:[#allocation3 + $0xa0] sm:$0xff]
    %v149 = vld [vmem:[#allocation3 + $0xa8] sm:$0xff]
    %v150 = vld [vmem:[#allocation3 + $0xb0] sm:$0xff]
    %v151 = vld [vmem:[#allocation3 + $0xb8] sm:$0xff]
    %v152 = vld [vmem:[#allocation3 + $0xc0] sm:$0xff]
    %v153 = vld [vmem:[#allocation3 + $0xc8] sm:$0xff]
    %v154 = vld [vmem:[#allocation3 + $0xd0] sm:$0xff]
    %v155 = vld [vmem:[#allocation3 + $0xd8] sm:$0xff]
    %v156 = vld [vmem:[#allocation3 + $0xe0] sm:$0xff]
    %v157 = vld [vmem:[#allocation3 + $0xe8] sm:$0xff]
    %v158 = vld [vmem:[#allocation3 + $0xf0] sm:$0xff]
    %v159 = vld [vmem:[#allocation3 + $0xf8] sm:$0xff]
    %v192 = vunpack.c.l.b16 %v128
    %v193 = vunpack.c.h.b16 %v128
    %v194 = vunpack.c.l.b16 %v129
    %v195 = vunpack.c.h.b16 %v129
    %v196 = vunpack.c.l.b16 %v130
    %v197 = vunpack.c.h.b16 %v130
    %v198 = vunpack.c.l.b16 %v131
    %v199 = vunpack.c.h.b16 %v131
    %v200 = vunpack.c.l.b16 %v132
    %v201 = vunpack.c.h.b16 %v132
    %v202 = vunpack.c.l.b16 %v133
    %v203 = vunpack.c.h.b16 %v133
    %v204 = vunpack.c.l.b16 %v134
    %v205 = vunpack.c.h.b16 %v134
    %v206 = vunpack.c.l.b16 %v135
    %v207 = vunpack.c.h.b16 %v135
    %v208 = vunpack.c.l.b16 %v136
    %v209 = vunpack.c.h.b16 %v136
    %v210 = vunpack.c.l.b16 %v137
    %v211 = vunpack.c.h.b16 %v137
    %v212 = vunpack.c.l.b16 %v138
    %v213 = vunpack.c.h.b16 %v138
    %v214 = vunpack.c.l.b16 %v139
    %v215 = vunpack.c.h.b16 %v139
    %v216 = vunpack.c.l.b16 %v140
    %v217 = vunpack.c.h.b16 %v140
    %v218 = vunpack.c.l.b16 %v141
    %v219 = vunpack.c.h.b16 %v141
    %v220 = vunpack.c.l.b16 %v142
    %v221 = vunpack.c.h.b16 %v142
    %v222 = vunpack.c.l.b16 %v143
    %v223 = vunpack.c.h.b16 %v143
    %v224 = vunpack.c.l.b16 %v144
    %v225 = vunpack.c.h.b16 %v144
    %v226 = vunpack.c.l.b16 %v145
    %v227 = vunpack.c.h.b16 %v145
    %v228 = vunpack.c.l.b16 %v146
    %v229 = vunpack.c.h.b16 %v146
    %v230 = vunpack.c.l.b16 %v147
    %v231 = vunpack.c.h.b16 %v147
    %v232 = vunpack.c.l.b16 %v148
    %v233 = vunpack.c.h.b16 %v148
    %v234 = vunpack.c.l.b16 %v149
    %v235 = vunpack.c.h.b16 %v149
    %v236 = vunpack.c.l.b16 %v150
    %v237 = vunpack.c.h.b16 %v150
    %v238 = vunpack.c.l.b16 %v151
    %v239 = vunpack.c.h.b16 %v151
    %v240 = vunpack.c.l.b16 %v152
    %v241 = vunpack.c.h.b16 %v152
    %v242 = vunpack.c.l.b16 %v153
    %v243 = vunpack.c.h.b16 %v153
    %v244 = vunpack.c.l.b16 %v154
    %v245 = vunpack.c.h.b16 %v154
    %v246 = vunpack.c.l.b16 %v155
    %v247 = vunpack.c.h.b16 %v155
    %v248 = vunpack.c.l.b16 %v156
    %v249 = vunpack.c.h.b16 %v156
    %v250 = vunpack.c.l.b16 %v157
    %v251 = vunpack.c.h.b16 %v157
    %v252 = vunpack.c.l.b16 %v158
    %v253 = vunpack.c.h.b16 %v158
    %v254 = vunpack.c.l.b16 %v159
    %v255 = vunpack.c.h.b16 %v159
    %v256 = vpack.c.b16 %v194, %v192
    %v257 = vpack.c.b16 %v195, %v193
    %v258 = vpack.c.b16 %v198, %v196
    %v259 = vpack.c.b16 %v199, %v197
    %v260 = vpack.c.b16 %v202, %v200
    %v261 = vpack.c.b16 %v203, %v201
    %v262 = vpack.c.b16 %v206, %v204
    %v263 = vpack.c.b16 %v207, %v205
    %v264 = vpack.c.b16 %v210, %v208
    %v265 = vpack.c.b16 %v211, %v209
    %v266 = vpack.c.b16 %v214, %v212
    %v267 = vpack.c.b16 %v215, %v213
    %v268 = vpack.c.b16 %v218, %v216
    %v269 = vpack.c.b16 %v219, %v217
    %v270 = vpack.c.b16 %v222, %v220
    %v271 = vpack.c.b16 %v223, %v221
    %v272 = vpack.c.b16 %v226, %v224
    %v273 = vpack.c.b16 %v227, %v225
    %v274 = vpack.c.b16 %v230, %v228
    %v275 = vpack.c.b16 %v231, %v229
    %v276 = vpack.c.b16 %v234, %v232
    %v277 = vpack.c.b16 %v235, %v233
    %v278 = vpack.c.b16 %v238, %v236
    %v279 = vpack.c.b16 %v239, %v237
    %v280 = vpack.c.b16 %v242, %v240
    %v281 = vpack.c.b16 %v243, %v241
    %v282 = vpack.c.b16 %v246, %v244
    %v283 = vpack.c.b16 %v247, %v245
    %v284 = vpack.c.b16 %v250, %v248
    %v285 = vpack.c.b16 %v251, %v249
    %v286 = vpack.c.b16 %v254, %v252
    %v287 = vpack.c.b16 %v255, %v253
    %320 = vmatprep.subr.bf16.mxu0 %v257
    %321 = vmatpush1.bf16.msra.mxu0 %v256
    %322 = vmatprep.subr.bf16.mxu0 %v259
    %323 = vmatpush1.bf16.msra.mxu0 %v258
    %324 = vmatprep.subr.bf16.mxu0 %v261
    %325 = vmatpush1.bf16.msra.mxu0 %v260
    %326 = vmatprep.subr.bf16.mxu0 %v263
    %327 = vmatpush1.bf16.msra.mxu0 %v262
    %328 = vmatprep.subr.bf16.mxu0 %v265
    %329 = vmatpush1.bf16.msra.mxu0 %v264
    %330 = vmatprep.subr.bf16.mxu0 %v267
    %331 = vmatpush1.bf16.msra.mxu0 %v266
    %332 = vmatprep.subr.bf16.mxu0 %v269
    %333 = vmatpush1.bf16.msra.mxu0 %v268
    %334 = vmatprep.subr.bf16.mxu0 %v271
    %335 = vmatpush1.bf16.msra.mxu0 %v270
    %336 = vmatprep.subr.bf16.mxu0 %v273
    %337 = vmatpush1.bf16.msra.mxu0 %v272
    %338 = vmatprep.subr.bf16.mxu0 %v275
    %339 = vmatpush1.bf16.msra.mxu0 %v274
    %340 = vmatprep.subr.bf16.mxu0 %v277
    %341 = vmatpush1.bf16.msra.mxu0 %v276
    %342 = vmatprep.subr.bf16.mxu0 %v279
    %343 = vmatpush1.bf16.msra.mxu0 %v278
    %344 = vmatprep.subr.bf16.mxu0 %v281
    %345 = vmatpush1.bf16.msra.mxu0 %v280
    %346 = vmatprep.subr.bf16.mxu0 %v283
    %347 = vmatpush1.bf16.msra.mxu0 %v282
    %348 = vmatprep.subr.bf16.mxu0 %v285
    %349 = vmatpush1.bf16.msra.mxu0 %v284
    %350 = vmatprep.subr.bf16.mxu0 %v287
    %351 = vmatpush1.bf16.msra.mxu0 %v286
    %352 = vmatprep.mubr.bf16.mxu0 %v125
    %353 = vmatmul.mubr.bf16.gmra.mrb[0].mxu0 %v124
    %v354 = vpop.f32.mrb[0].mxu0
    %v355 = vadd.f32 %v108, %v354
    %v356 = vpop.f32.mrb[0].mxu0
    %v357 = vadd.f32 %v110, %v356
    %v358 = vpop.f32.mrb[0].mxu0
    %v359 = vadd.f32 %v112, %v358
    %v360 = vpop.f32.mrb[0].mxu0
    %v361 = vadd.f32 %v114, %v360
    %362 = vmatprep.mubr.bf16.mxu0 %v127
    %363 = vmatmul.mubr.bf16.gmra.mrb[0].mxu0 %v126
    %v364 = vpop.f32.mrb[0].mxu0
    %v365 = vadd.f32 %v118, %v364
    %v366 = vpop.f32.mrb[0].mxu0
    %v367 = vadd.f32 %v120, %v366
    %v368 = vpop.f32.mrb[0].mxu0
    %v369 = vpop.f32.mrb[0].mxu0
    %370 = vdwg.mxu0
    %v371 = vld [vmem:[%s4] sm:$0x3]
    %v373 = vlaneseq
    %v374 = vshrl.u32 %v373, 7
    %v375 = vsub.s32 0, %v374
    %v376 = vrot.slane %v371, %v375
    %v377 = vlaneseq
    %v378 = vshrl.u32 %v377, 7
    %v379 = vsub.s32 1, %v378
    %v380 = vrot.slane %v371, %v379
    %v383 = vadd.f32 %v355, %v376
    %v384 = vadd.f32 %v357, %v380
    %v385 = vadd.f32 %v359, %v376
    %v386 = vadd.f32 %v361, %v380
    %v387 = vadd.f32 %v365, %v376
    %v388 = vadd.f32 %v367, %v380
    %v389 = vmax.f32 %v383, 0.0
    %v390 = vmax.f32 %v384, 0.0
    %v391 = vmax.f32 %v385, 0.0
    %v392 = vmax.f32 %v386, 0.0
    %v393 = vmax.f32 %v387, 0.0
    %v394 = vmax.f32 %v388, 0.0
    %v395 = vpack.c.bf16 %v391, %v389
    %v396 = vpack.c.bf16 %v392, %v390
    %v397 = vpack.c.bf16 %v393, %v393
    %v398 = vpack.c.bf16 %v394, %v394
    %v399 = vld [vmem:[%s5] sm:$0xf]
    %v400 = vld [vmem:[%s5 + $0x4] sm:$0xf]
    %v401 = vld [vmem:[%s5 + $0x8] sm:$0xf]
    %v402 = vld [vmem:[%s5 + $0xc] sm:$0xf]
    %v403 = vld [vmem:[%s5 + $0x10] sm:$0xf]
    %v404 = vld [vmem:[%s5 + $0x14] sm:$0xf]
    %v405 = vld [vmem:[%s5 + $0x18] sm:$0xf]
    %v406 = vld [vmem:[%s5 + $0x1c] sm:$0xf]
    %v407 = vld [vmem:[%s5 + $0x20] sm:$0xf]
    %v408 = vld [vmem:[%s5 + $0x24] sm:$0xf]
    %v409 = vld [vmem:[%s5 + $0x28] sm:$0xf]
    %v410 = vld [vmem:[%s5 + $0x2c] sm:$0xf]
    %v411 = vld [vmem:[%s5 + $0x30] sm:$0xf]
    %v412 = vld [vmem:[%s5 + $0x34] sm:$0xf]
    %v413 = vld [vmem:[%s5 + $0x38] sm:$0xf]
    %v414 = vld [vmem:[%s5 + $0x3c] sm:$0xf]
    %v415 = vld [vmem:[%s5 + $0x40] sm:$0xf]
    %v416 = vld [vmem:[%s5 + $0x44] sm:$0xf]
    %v417 = vld [vmem:[%s5 + $0x48] sm:$0xf]
    %v418 = vld [vmem:[%s5 + $0x4c] sm:$0xf]
    %v419 = vld [vmem:[%s5 + $0x50] sm:$0xf]
    %v420 = vld [vmem:[%s5 + $0x54] sm:$0xf]
    %v421 = vld [vmem:[%s5 + $0x58] sm:$0xf]
    %v422 = vld [vmem:[%s5 + $0x5c] sm:$0xf]
    %v423 = vld [vmem:[%s5 + $0x60] sm:$0xf]
    %v424 = vld [vmem:[%s5 + $0x64] sm:$0xf]
    %v425 = vld [vmem:[%s5 + $0x68] sm:$0xf]
    %v426 = vld [vmem:[%s5 + $0x6c] sm:$0xf]
    %v427 = vld [vmem:[%s5 + $0x70] sm:$0xf]
    %v428 = vld [vmem:[%s5 + $0x74] sm:$0xf]
    %v429 = vld [vmem:[%s5 + $0x78] sm:$0xf]
    %v430 = vld [vmem:[%s5 + $0x7c] sm:$0xf]
    %s431 = sld [smem:[#allocation2]]
    %v432 = vstv %s431
    %v465 = vunpack.c.l.b16 %v399
    %v466 = vunpack.c.l.b16 %v400
    %v467 = vunpack.c.l.b16 %v401
    %v468 = vunpack.c.l.b16 %v402
    %v469 = vunpack.c.l.b16 %v403
    %v470 = vunpack.c.l.b16 %v404
    %v471 = vunpack.c.l.b16 %v405
    %v472 = vunpack.c.l.b16 %v406
    %v473 = vunpack.c.l.b16 %v407
    %v474 = vunpack.c.l.b16 %v408
    %v475 = vunpack.c.l.b16 %v409
    %v476 = vunpack.c.l.b16 %v410
    %v477 = vunpack.c.l.b16 %v411
    %v478 = vunpack.c.l.b16 %v412
    %v479 = vunpack.c.l.b16 %v413
    %v480 = vunpack.c.l.b16 %v414
    %v481 = vunpack.c.l.b16 %v415
    %v482 = vunpack.c.l.b16 %v416
    %v483 = vunpack.c.l.b16 %v417
    %v484 = vunpack.c.l.b16 %v418
    %v485 = vunpack.c.l.b16 %v419
    %v486 = vunpack.c.l.b16 %v420
    %v487 = vunpack.c.l.b16 %v421
    %v488 = vunpack.c.l.b16 %v422
    %v489 = vunpack.c.l.b16 %v423
    %v490 = vunpack.c.l.b16 %v424
    %v491 = vunpack.c.l.b16 %v425
    %v492 = vunpack.c.l.b16 %v426
    %v493 = vunpack.c.l.b16 %v427
    %v494 = vunpack.c.l.b16 %v428
    %v495 = vunpack.c.l.b16 %v429
    %v496 = vunpack.c.l.b16 %v430
    %v497 = vpack.c.b16 %v466, %v465
    %v498 = vpack.c.b16 %v468, %v467
    %v499 = vpack.c.b16 %v470, %v469
    %v500 = vpack.c.b16 %v472, %v471
    %v501 = vpack.c.b16 %v474, %v473
    %v502 = vpack.c.b16 %v476, %v475
    %v503 = vpack.c.b16 %v478, %v477
    %v504 = vpack.c.b16 %v480, %v479
    %v505 = vpack.c.b16 %v482, %v481
    %v506 = vpack.c.b16 %v484, %v483
    %v507 = vpack.c.b16 %v486, %v485
    %v508 = vpack.c.b16 %v488, %v487
    %v509 = vpack.c.b16 %v490, %v489
    %v510 = vpack.c.b16 %v492, %v491
    %v511 = vpack.c.b16 %v494, %v493
    %v512 = vpack.c.b16 %v496, %v495
    %529 = vmatprep.subr.bf16.mxu0 0
    %530 = vmatpush1.bf16.msra.mxu0 %v497
    %531 = vmatprep.subr.bf16.mxu0 0
    %532 = vmatpush1.bf16.msra.mxu0 %v498
    %533 = vmatprep.subr.bf16.mxu0 0
    %534 = vmatpush1.bf16.msra.mxu0 %v499
    %535 = vmatprep.subr.bf16.mxu0 0
    %536 = vmatpush1.bf16.msra.mxu0 %v500
    %537 = vmatprep.subr.bf16.mxu0 0
    %538 = vmatpush1.bf16.msra.mxu0 %v501
    %539 = vmatprep.subr.bf16.mxu0 0
    %540 = vmatpush1.bf16.msra.mxu0 %v502
    %541 = vmatprep.subr.bf16.mxu0 0
    %542 = vmatpush1.bf16.msra.mxu0 %v503
    %543 = vmatprep.subr.bf16.mxu0 0
    %544 = vmatpush1.bf16.msra.mxu0 %v504
    %545 = vmatprep.subr.bf16.mxu0 0
    %546 = vmatpush1.bf16.msra.mxu0 %v505
    %547 = vmatprep.subr.bf16.mxu0 0
    %548 = vmatpush1.bf16.msra.mxu0 %v506
    %549 = vmatprep.subr.bf16.mxu0 0
    %550 = vmatpush1.bf16.msra.mxu0 %v507
    %551 = vmatprep.subr.bf16.mxu0 0
    %552 = vmatpush1.bf16.msra.mxu0 %v508
    %553 = vmatprep.subr.bf16.mxu0 0
    %554 = vmatpush1.bf16.msra.mxu0 %v509
    %555 = vmatprep.subr.bf16.mxu0 0
    %556 = vmatpush1.bf16.msra.mxu0 %v510
    %557 = vmatprep.subr.bf16.mxu0 0
    %558 = vmatpush1.bf16.msra.mxu0 %v511
    %559 = vmatprep.subr.bf16.mxu0 0
    %560 = vmatpush1.bf16.msra.mxu0 %v512
    %561 = vmatprep.mubr.bf16.mxu0 %v396
    %562 = vmatmul.mubr.bf16.gmra.mrb[0].mxu0 %v395
    %v563 = vpop.f32.mrb[0].mxu0
    %v564 = vadd.f32 %v432, %v563
    %v565 = vpop.f32.mrb[0].mxu0
    %v566 = vpop.f32.mrb[0].mxu0
    %v567 = vadd.f32 %v432, %v566
    %v568 = vpop.f32.mrb[0].mxu0
    %569 = vmatprep.mubr.bf16.mxu0 %v398
    %570 = vmatmul.mubr.bf16.gmra.mrb[0].mxu0 %v397
    %v571 = vpop.f32.mrb[0].mxu0
    %v572 = vadd.f32 %v432, %v571
    %v573 = vpop.f32.mrb[0].mxu0
    %v574 = vpop.f32.mrb[0].mxu0
    %v575 = vpop.f32.mrb[0].mxu0
    %576 = vdwg.mxu0
    %vm577 = vcmask 64512
    %v578 = vsel %vm577, %v564, -inf
    %579 = vmax.xlane.f32.xlu0 %v578
    %v580 = vpop.xlane.xlu0 %579
    %v581 = vsel %vm577, %v567, -inf
    %582 = vmax.xlane.f32.xlu0 %v581
    %v583 = vpop.xlane.xlu0 %582
    %vm584 = vcmask 60416
    %v585 = vsel %vm584, %v572, -inf
    %586 = vmax.xlane.f32.xlu0 %v585
    %v587 = vpop.xlane.xlu0 %586
    %v588 = vsub.f32 %v564, %v580
    %v589 = vsub.f32 %v567, %v583
    %v590 = vsub.f32 %v572, %v587
    %v591 = vmul.f32 %v588, 1.442695
    %v592 = vpow.pop %v591
    %v593 = vmul.f32 %v589, 1.442695
    %v594 = vpow.pop %v593
    %v595 = vmul.f32 %v590, 1.442695
    %v596 = vpow.pop %v595
    %v597 = vsel %vm577, %v592, 0.0
    %598 = vadd.xlane.f32.xlu0 %v597
    %v599 = vpop.xlane.xlu0 %598
    %v600 = vsel %vm577, %v594, 0.0
    %601 = vadd.xlane.f32.xlu0 %v600
    %v602 = vpop.xlane.xlu0 %601
    %v603 = vsel %vm584, %v596, 0.0
    %604 = vadd.xlane.f32.xlu0 %v603
    %v605 = vpop.xlane.xlu0 %604
    %v606 = vrcp.pop %v599
    %v607 = vrcp.pop %v602
    %v608 = vrcp.pop %v605
    %v609 = vmul.f32 %v592, %v606
    %v610 = vmul.f32 %v594, %v607
    %v611 = vmul.f32 %v596, %v608
    %613 = vset.pattern.permute.xlu0 0
    %614 = vperm.xlu0 %613, %v609
    %v615 = vpop.permute.xlu0 %614
    %618 = vset.pattern.permute.xlu0 0
    %619 = vperm.xlu0 %618, %v610
    %v620 = vpop.permute.xlu0 %619
    %623 = vset.pattern.permute.xlu0 0
    %624 = vperm.xlu0 %623, %v611
    %v625 = vpop.permute.xlu0 %624
    %v627 = vmul.f32 %v615, %v43
    %v628 = vmul.f32 %v620, %v45
    %v629 = vmul.f32 %v625, %v47
    %630 = vset.pattern.permute.xlu0 1
    %631 = vperm.xlu0 %630, %v609
    %v632 = vpop.permute.xlu0 %631
    %634 = vset.pattern.permute.xlu0 1
    %635 = vperm.xlu0 %634, %v610
    %v636 = vpop.permute.xlu0 %635
    %638 = vset.pattern.permute.xlu0 1
    %639 = vperm.xlu0 %638, %v611
    %v640 = vpop.permute.xlu0 %639
    %v642 = vmul.f32 %v632, %v43
    %v643 = vmul.f32 %v636, %v45
    %v644 = vmul.f32 %v640, %v47
    %648 = vrot.lane.b32.xlu0 %v642, 96
    %v649 = vpop.permute.xlu0 %648
    %650 = vrot.lane.b32.xlu0 %v643, 96
    %v651 = vpop.permute.xlu0 %650
    %652 = vrot.lane.b32.xlu0 %v644, 96
    %v653 = vpop.permute.xlu0 %652
    %v657 = vadd.f32 %v627, %v649
    %v658 = vadd.f32 %v628, %v651
    %v659 = vadd.f32 %v629, %v653
    %660 = vset.pattern.permute.xlu0 2
    %661 = vperm.xlu0 %660, %v609
    %v662 = vpop.permute.xlu0 %661
    %664 = vset.pattern.permute.xlu0 2
    %665 = vperm.xlu0 %664, %v610
    %v666 = vpop.permute.xlu0 %665
    %668 = vset.pattern.permute.xlu0 2
    %669 = vperm.xlu0 %668, %v611
    %v670 = vpop.permute.xlu0 %669
    %v672 = vmul.f32 %v662, %v43
    %v673 = vmul.f32 %v666, %v45
    %v674 = vmul.f32 %v670, %v47
    %678 = vrot.lane.b32.xlu0 %v672, 64
    %v679 = vpop.permute.xlu0 %678
    %680 = vrot.lane.b32.xlu0 %v673, 64
    %v681 = vpop.permute.xlu0 %680
    %682 = vrot.lane.b32.xlu0 %v674, 64
    %v683 = vpop.permute.xlu0 %682
    %v687 = vadd.f32 %v657, %v679
    %v688 = vadd.f32 %v658, %v681
    %v689 = vadd.f32 %v659, %v683
    %690 = vset.pattern.permute.xlu0 3
    %691 = vperm.xlu0 %690, %v609
    %v692 = vpop.permute.xlu0 %691
    %694 = vset.pattern.permute.xlu0 3
    %695 = vperm.xlu0 %694, %v610
    %v696 = vpop.permute.xlu0 %695
    %698 = vset.pattern.permute.xlu0 3
    %699 = vperm.xlu0 %698, %v611
    %v700 = vpop.permute.xlu0 %699
    %v702 = vmul.f32 %v692, %v43
    %v703 = vmul.f32 %v696, %v45
    %v704 = vmul.f32 %v700, %v47
    %708 = vrot.lane.b32.xlu0 %v702, 32
    %v709 = vpop.permute.xlu0 %708
    %710 = vrot.lane.b32.xlu0 %v703, 32
    %v711 = vpop.permute.xlu0 %710
    %712 = vrot.lane.b32.xlu0 %v704, 32
    %v713 = vpop.permute.xlu0 %712
    %v717 = vadd.f32 %v687, %v709
    %v718 = vadd.f32 %v688, %v711
    %v719 = vadd.f32 %v689, %v713
    %720 = vset.pattern.permute.xlu0 4
    %721 = vperm.xlu0 %720, %v609
    %v722 = vpop.permute.xlu0 %721
    %724 = vset.pattern.permute.xlu0 4
    %725 = vperm.xlu0 %724, %v610
    %v726 = vpop.permute.xlu0 %725
    %728 = vset.pattern.permute.xlu0 4
    %729 = vperm.xlu0 %728, %v611
    %v730 = vpop.permute.xlu0 %729
    %v732 = vmul.f32 %v722, %v44
    %v733 = vmul.f32 %v726, %v46
    %v734 = vmul.f32 %v730, %v48
    %v735 = vadd.f32 %v717, %v732
    %v736 = vadd.f32 %v718, %v733
    %v737 = vadd.f32 %v719, %v734
    %738 = vset.pattern.permute.xlu0 5
    %739 = vperm.xlu0 %738, %v609
    %v740 = vpop.permute.xlu0 %739
    %742 = vset.pattern.permute.xlu0 5
    %743 = vperm.xlu0 %742, %v610
    %v744 = vpop.permute.xlu0 %743
    %746 = vset.pattern.permute.xlu0 5
    %747 = vperm.xlu0 %746, %v611
    %v748 = vpop.permute.xlu0 %747
    %v750 = vmul.f32 %v740, %v44
    %v751 = vmul.f32 %v744, %v46
    %v752 = vmul.f32 %v748, %v48
    %756 = vrot.lane.b32.xlu0 %v750, 96
    %v757 = vpop.permute.xlu0 %756
    %758 = vrot.lane.b32.xlu0 %v751, 96
    %v759 = vpop.permute.xlu0 %758
    %760 = vrot.lane.b32.xlu0 %v752, 96
    %v761 = vpop.permute.xlu0 %760
    %v765 = vadd.f32 %v735, %v757
    %v766 = vadd.f32 %v736, %v759
    %v767 = vadd.f32 %v737, %v761
    %768 = vset.pattern.permute.xlu0 6
    %769 = vperm.xlu0 %768, %v609
    %v770 = vpop.permute.xlu0 %769
    %772 = vset.pattern.permute.xlu0 6
    %773 = vperm.xlu0 %772, %v610
    %v774 = vpop.permute.xlu0 %773
    %776 = vset.pattern.permute.xlu0 6
    %777 = vperm.xlu0 %776, %v611
    %v778 = vpop.permute.xlu0 %777
    %v780 = vmul.f32 %v770, %v44
    %v781 = vmul.f32 %v774, %v46
    %v782 = vmul.f32 %v778, %v48
    %786 = vrot.lane.b32.xlu0 %v780, 64
    %v787 = vpop.permute.xlu0 %786
    %788 = vrot.lane.b32.xlu0 %v781, 64
    %v789 = vpop.permute.xlu0 %788
    %790 = vrot.lane.b32.xlu0 %v782, 64
    %v791 = vpop.permute.xlu0 %790
    %v795 = vadd.f32 %v765, %v787
    %v796 = vadd.f32 %v766, %v789
    %v797 = vadd.f32 %v767, %v791
    %798 = vset.pattern.permute.xlu0 7
    %799 = vperm.xlu0 %798, %v609
    %v800 = vpop.permute.xlu0 %799
    %802 = vset.pattern.permute.xlu0 7
    %803 = vperm.xlu0 %802, %v610
    %v804 = vpop.permute.xlu0 %803
    %806 = vset.pattern.permute.xlu0 7
    %807 = vperm.xlu0 %806, %v611
    %v808 = vpop.permute.xlu0 %807
    %v810 = vmul.f32 %v800, %v44
    %v811 = vmul.f32 %v804, %v46
    %v812 = vmul.f32 %v808, %v48
    %816 = vrot.lane.b32.xlu0 %v810, 32
    %v817 = vpop.permute.xlu0 %816
    %818 = vrot.lane.b32.xlu0 %v811, 32
    %v819 = vpop.permute.xlu0 %818
    %820 = vrot.lane.b32.xlu0 %v812, 32
    %v821 = vpop.permute.xlu0 %820
    %v825 = vadd.f32 %v795, %v817
    %v826 = vadd.f32 %v796, %v819
    %v827 = vadd.f32 %v797, %v821
    %vm828 = vcmask 261120
    %829 = vst.msk [vmem:[#allocation6] sm:$0xff] %vm828, %v825
    %830 = vst.msk [vmem:[#allocation6 + $0x8] sm:$0xff] %vm828, %v826
    %vm831 = vcmask 257024
    %832 = vst.msk [vmem:[#allocation6 + $0x10] sm:$0xf] %vm831, %v827
    // Predicated region
    $region34: #{tpu_custom_call.1} parent=1 // pred_check
      _
    $region35: #{tpu_custom_call.1} parent=1 // pred_check_branch
      %834 = sbr.rel (0) target = $region37
    $region36: #{tpu_custom_call.1} parent=1 // pred_region
      %s836 = ssub.s32 384, 384
      %837 = vsyncadd [#allocation5], %s836
      %s838 = sshll.u32 [#allocation6], 4
      %s839 = int_to_ptr.vmem [resolvable:$true] %s838
      %844 = dma.vmem_to_hbm [thread:$0]  %s839, 384, %s7, [#allocation5], 128, 128, 8
    $region37: #{tpu_custom_call.1} parent=1 // pred_fallthru
      _
    // Predicated region
    $region38: #{tpu_custom_call.1} parent=1 // pred_check
      _
    $region39: #{tpu_custom_call.1} parent=1 // pred_check_branch
      %846 = sbr.rel (0) target = $region41
    $region40: #{tpu_custom_call.1} parent=1 // pred_region
      %847 = dma.done [#allocation5], 384
    $region41: #{tpu_custom_call.1} parent=1 // pred_fallthru
      _
    %848 = vsyncpa [#allocation4], 1
    %849 = vsyncpa [#allocation5], 1

</llo_original>
